<compile_context>
chip_gen: v6e
topology: v6e:2x2x1
jax: 0.10.0
libtpu: 0.0.40
codegen_flags: <defaults>
</compile_context>

<pallas_src>
import jax
import jax.numpy as jnp
from jax.experimental import pallas as pl
from jax.experimental.pallas import tpu as pltpu


def _round_up(x, m):
    return ((x + m - 1) // m) * m


def _discriminator_kernel(embed_ref, w_ref, bias_ref, mask_ref, wh_ref, bh_ref,
                          out_ref):
    """Conv bank + maxpool + fused linear heads for one batch tile."""
    TB, P, D = embed_ref.shape
    H = w_ref.shape[0]
    FM = w_ref.shape[2]
    N = TB * P

    x = embed_ref[...].reshape(N, D)                          # (TB*P, D) bf16

    # Conv bank: one (TB*P, D) x (D, FM) MXU matmul per kernel row; the row
    # offset becomes a sublane rotation of the f32 result (XLU slot, ~free).
    # acc[q] += y[q + dh]; wrapped / cross-batch rows are masked below.
    acc = jnp.dot(x, w_ref[0], preferred_element_type=jnp.float32)    # (N, FM)
    for dh in range(1, H):
        y = jnp.dot(x, w_ref[dh], preferred_element_type=jnp.float32)
        acc = acc + pltpu.roll(y, shift=N - dh, axis=0)

    # Mask invalid tail positions per filter bank (2-D, pre-tiled mask), then
    # max-pool over the sequence axis.  Bias added after the max (equivalent).
    acc = acc + mask_ref[...]                                 # (N, FM)
    sent = jnp.max(acc.reshape(TB, P, FM), axis=1) + bias_ref[...]    # (TB, FM)

    # Fused linear heads (bf16 MXU): columns [0] = pred logit, [1:] = recon_z.
    heads = jnp.dot(sent.astype(jnp.bfloat16), wh_ref[...],
                    preferred_element_type=jnp.float32) + bh_ref[...]
    pred = jax.nn.sigmoid(heads[:, 0:1])

    # Single fused lane-dense store: [pred | recon_z | sent_vec].
    out_ref[...] = jnp.concatenate([pred, heads[:, 1:], sent], axis=1)


def discriminator_forward(s, emb_table, conv_ws, conv_bs, wl, bl, wr, br,
                          conv_sizes, batch_tile=None):
    """Returns (pred, recon_z, sent_vec) matching the PyTorch module."""
    conv_sizes = tuple(int(h) for h in conv_sizes)
    m = len(conv_sizes)
    f = conv_ws[0].shape[-1]
    FM = f * m
    latent = wr.shape[1]
    H = max(conv_sizes)
    C = 1 + latent + FM

    B, P = s.shape
    D = emb_table.shape[1]
    assert P >= H, "padding_size must be >= max(conv_sizes)"

    # Generation-aware VMEM budgeting (v7x: 64 MiB, v5e/v6e: 128 MiB).
    try:
        vmem_cap = int(pltpu.get_tpu_info().vmem_capacity_bytes)
    except Exception:  # CPU interpret / older jax: conservative default.
        vmem_cap = 64 * 1024 * 1024
    tile_budget = min(24 * 1024 * 1024, vmem_cap // 4)

    def step_bytes(tb):
        n = tb * P
        return (2 * tb * P * D * 2          # double-buffered bf16 embed tile
                + 2 * H * D * FM * 2        # conv weight slab (double-buffered)
                + n * FM * 4                # pre-tiled additive mask
                + 3 * n * FM * 4            # f32 conv accumulator + headroom
                + 2 * tb * C * 4            # fused output tile
                + 2 * (FM + 2) * (1 + latent) * 4)

    # Batch tile: large (few grid steps), multiple of 8, within VMEM budget,
    # and >= 2 parallel steps whenever the batch allows (v7x has 2 TCs).
    Bp8 = _round_up(max(B, 1), 8)
    if batch_tile is not None:
        tb = min(max(8, (int(batch_tile) // 8) * 8), Bp8)
    else:
        tb = min(256, Bp8)
        while tb > 8 and step_bytes(tb) > tile_budget:
            tb -= 8
        if Bp8 > 8 and tb >= Bp8:
            tb = max(8, _round_up((Bp8 + 1) // 2, 8))
    Bp = _round_up(B, tb)
    grid = (Bp // tb,)

    # Embedding lookup stays in XLA, but the table is cast to bf16 BEFORE the
    # gather so the (B, P, D) round-trip through HBM is half the bytes.
    # TODO(synk): fuse the gather via PrefetchScalarGridSpec (token ids in
    # SMEM) + in-kernel row DMA to remove the embed HBM round-trip entirely.
    embed = jnp.take(emb_table.astype(jnp.bfloat16), s, axis=0)   # (B, P, D)
    if Bp != B:
        embed = jnp.pad(embed, ((0, Bp - B), (0, 0), (0, 0)))

    # Pack all conv banks into one (H, D, FM) bf16 slab (zero-pad kernel rows).
    w_all = jnp.concatenate(
        [jnp.pad(w, ((0, H - h), (0, 0), (0, 0)))
         for h, w in zip(conv_sizes, conv_ws)],
        axis=-1).astype(jnp.bfloat16)                        # (H, D, FM)
    bias_all = jnp.concatenate(
        [jnp.reshape(b, (1, f)) for b in conv_bs], axis=-1).astype(jnp.float32)

    # Additive mask: 0 on valid conv positions, -1e30 past L_i = P - h_i + 1.
    # Pre-tiled to (tb*P, FM) so the kernel applies it on the 2-D accumulator.
    pos = jnp.arange(P, dtype=jnp.int32)[:, None]            # (P, 1)
    cols = []
    for h in conv_sizes:
        col = jnp.where(pos < (P - h + 1), 0.0, -1e30).astype(jnp.float32)
        cols.append(jnp.broadcast_to(col, (P, f)))
    mask2d = jnp.tile(jnp.concatenate(cols, axis=-1), (tb, 1))   # (tb*P, FM)

    # Fuse the two linear heads into one bf16 matmul.
    w_heads = jnp.concatenate([wl, wr], axis=1).astype(jnp.bfloat16)
    b_heads = jnp.concatenate(
        [jnp.reshape(bl, (1, 1)), jnp.reshape(br, (1, latent))],
        axis=1).astype(jnp.float32)

    vmem_limit = int(min(vmem_cap // 2,
                         max(8 * 1024 * 1024, 4 * step_bytes(tb))))

    out = pl.pallas_call(
        _discriminator_kernel,
        out_shape=jax.ShapeDtypeStruct((Bp, C), jnp.float32),
        grid=grid,
        in_specs=[
            pl.BlockSpec((tb, P, D), lambda b: (b, 0, 0)),        # embed tile
            pl.BlockSpec((H, D, FM), lambda b: (0, 0, 0)),        # conv weights
            pl.BlockSpec((1, FM), lambda b: (0, 0)),              # conv bias
            pl.BlockSpec((tb * P, FM), lambda b: (0, 0)),         # position mask
            pl.BlockSpec((FM, 1 + latent), lambda b: (0, 0)),     # fused heads W
            pl.BlockSpec((1, 1 + latent), lambda b: (0, 0)),      # fused heads b
        ],
        out_specs=pl.BlockSpec((tb, C), lambda b: (b, 0)),        # fused output
        compiler_params=pltpu.CompilerParams(
            dimension_semantics=("parallel",),
            vmem_limit_bytes=vmem_limit,
        ),
    )(embed, w_all, bias_all, mask2d, w_heads, b_heads)

    pred = out[:B, 0:1]
    recon = out[:B, 1:1 + latent]
    sent = out[:B, 1 + latent:]
    return pred, recon, sent


def discriminator_reference(s, emb_table, conv_ws, conv_bs, wl, bl, wr, br,
                            conv_sizes):
    """Pure-JAX f32 reference (same math as the PyTorch forward)."""
    embed = jnp.take(emb_table, s, axis=0)
    B, P, D = embed.shape
    feats = []
    for h, w, bb in zip(conv_sizes, conv_ws, conv_bs):
        L = P - h + 1
        acc = jnp.zeros((B, L, w.shape[-1]), jnp.float32)
        for dh in range(h):
            acc = acc + jnp.einsum('bld,df->blf', embed[:, dh:dh + L, :], w[dh])
        acc = acc + jnp.reshape(bb, (1, 1, -1))
        feats.append(jnp.max(acc, axis=1))
    sent = jnp.concatenate(feats, axis=1)
    recon = sent @ wr + jnp.reshape(br, (1, -1))
    pred = jax.nn.sigmoid(sent @ wl + jnp.reshape(bl, (1, 1)))
    return pred, recon, sent


if __name__ == "__main__":
    # Small shapes consistent with the module.
    P, D = 16, 32                  # padding_size, embedding_dim
    f = 4                          # filters per conv size
    conv_sizes = (3, 4, 5)         # m = 3
    latent = 8
    vocab = 50
    FM = f * len(conv_sizes)

    key = jax.random.PRNGKey(0)
    keys = jax.random.split(key, 16)

    emb_table = 0.1 * jax.random.normal(keys[0], (vocab, D), jnp.float32)

    conv_ws, conv_bs = [], []
    for i, h in enumerate(conv_sizes):
        bound = 1.0 / float(h * D) ** 0.5
        conv_ws.append(jax.random.uniform(keys[1 + 2 * i], (h, D, f),
                                          jnp.float32, -bound, bound))
        conv_bs.append(jax.random.uniform(keys[2 + 2 * i], (1, f),
                                          jnp.float32, -bound, bound))

    bound = 1.0 / float(FM) ** 0.5
    wl = jax.random.uniform(keys[7], (FM, 1), jnp.float32, -bound, bound)
    bl = jax.random.uniform(keys[8], (1, 1), jnp.float32, -bound, bound)
    wr = jax.random.uniform(keys[9], (FM, latent), jnp.float32, -bound, bound)
    br = jax.random.uniform(keys[10], (1, latent), jnp.float32, -bound, bound)

    ok = True
    # B=2 exercises the tiny-batch single-step path; B=24 exercises batch
    # padding plus a multi-step parallel grid.
    for B in (2, 24):
        s = jax.random.randint(keys[11], (B, P), 0, vocab, dtype=jnp.int32)

        pred, recon, sent = discriminator_forward(
            s, emb_table, conv_ws, conv_bs, wl, bl, wr, br, conv_sizes)
        jax.block_until_ready((pred, recon, sent))

        pred_r, recon_r, sent_r = discriminator_reference(
            s, emb_table, conv_ws, conv_bs, wl, bl, wr, br, conv_sizes)

        assert pred.shape == (B, 1) and recon.shape == (B, latent) \
            and sent.shape == (B, FM)
        # bf16 matmul inputs -> loose tolerance vs the f32 reference.
        ok &= bool(jnp.allclose(pred, pred_r, rtol=2e-2, atol=2e-2))
        ok &= bool(jnp.allclose(recon, recon_r, rtol=2e-2, atol=2e-2))
        ok &= bool(jnp.allclose(sent, sent_r, rtol=2e-2, atol=2e-2))

    assert ok
    print("KERNEL_OK")
</pallas_src>

<mosaic_0001>
module attributes {stable_mosaic.version = 11 : i64} {
  func.func @_discriminator_kernel(%arg0: i32, %arg1: memref<8x16x32xbf16, #tpu.memory_space<vmem>>, %arg2: memref<5x32x12xbf16, #tpu.memory_space<vmem>>, %arg3: memref<1x12xf32, #tpu.memory_space<vmem>>, %arg4: memref<128x12xf32, #tpu.memory_space<vmem>>, %arg5: memref<12x9xbf16, #tpu.memory_space<vmem>>, %arg6: memref<1x9xf32, #tpu.memory_space<vmem>>, %arg7: memref<8x21xf32, #tpu.memory_space<vmem>>) attributes {dimension_semantics = [#tpu.dimension_semantics<parallel>], iteration_bounds = array<i64: 1>, scalar_prefetch = 0 : i64, scratch_operands = 0 : i64, tpu.core_type = #tpu.core_type<tc>, window_params = [{transform_indices = @transform_0, window_bounds = array<i64: 8, 16, 32>}, {pipeline_mode = #tpu.pipeline_mode<synchronous>, transform_indices = @transform_1, window_bounds = array<i64: 5, 32, 12>}, {pipeline_mode = #tpu.pipeline_mode<synchronous>, transform_indices = @transform_2, window_bounds = array<i64: 1, 12>}, {pipeline_mode = #tpu.pipeline_mode<synchronous>, transform_indices = @transform_3, window_bounds = array<i64: 128, 12>}, {pipeline_mode = #tpu.pipeline_mode<synchronous>, transform_indices = @transform_4, window_bounds = array<i64: 12, 9>}, {pipeline_mode = #tpu.pipeline_mode<synchronous>, transform_indices = @transform_5, window_bounds = array<i64: 1, 9>}, {transform_indices = @transform_6, window_bounds = array<i64: 8, 21>}]} {
    %c0 = arith.constant 0 : index
    %c0_0 = arith.constant 0 : index
    %c0_1 = arith.constant 0 : index
    %0 = vector.load %arg1[%c0, %c0_0, %c0_1] : memref<8x16x32xbf16, #tpu.memory_space<vmem>>, vector<8x16x32xbf16>
    %1 = vector.shape_cast %0 : vector<8x16x32xbf16> to vector<128x32xbf16>
    %c0_2 = arith.constant 0 : index
    %c0_3 = arith.constant 0 : index
    %c0_4 = arith.constant 0 : index
    %2 = vector.load %arg2[%c0_2, %c0_3, %c0_4] : memref<5x32x12xbf16, #tpu.memory_space<vmem>>, vector<1x32x12xbf16>
    %3 = vector.shape_cast %2 : vector<1x32x12xbf16> to vector<32x12xbf16>
    %cst = arith.constant dense<0.000000e+00> : vector<128x12xf32>
    %4 = tpu.matmul %1, %3, %cst {dimension_numbers = #tpu.dot_dimension_numbers<[1], [0], [0], [1], [0, 0, 1, 1], [], []>} : vector<128x32xbf16>, vector<32x12xbf16>, vector<128x12xf32> -> vector<128x12xf32>
    %c1 = arith.constant 1 : index
    %c0_5 = arith.constant 0 : index
    %c0_6 = arith.constant 0 : index
    %5 = vector.load %arg2[%c1, %c0_5, %c0_6] : memref<5x32x12xbf16, #tpu.memory_space<vmem>>, vector<1x32x12xbf16>
    %6 = vector.shape_cast %5 : vector<1x32x12xbf16> to vector<32x12xbf16>
    %cst_7 = arith.constant dense<0.000000e+00> : vector<128x12xf32>
    %7 = tpu.matmul %1, %6, %cst_7 {dimension_numbers = #tpu.dot_dimension_numbers<[1], [0], [0], [1], [0, 0, 1, 1], [], []>} : vector<128x32xbf16>, vector<32x12xbf16>, vector<128x12xf32> -> vector<128x12xf32>
    %c127_i32 = arith.constant 127 : i32
    %8 = tpu.dynamic_rotate %7 by %c127_i32 dim 0 : vector<128x12xf32>, i32 -> vector<128x12xf32>
    %9 = arith.addf %4, %8 : vector<128x12xf32>
    %c2 = arith.constant 2 : index
    %c0_8 = arith.constant 0 : index
    %c0_9 = arith.constant 0 : index
    %10 = vector.load %arg2[%c2, %c0_8, %c0_9] : memref<5x32x12xbf16, #tpu.memory_space<vmem>>, vector<1x32x12xbf16>
    %11 = vector.shape_cast %10 : vector<1x32x12xbf16> to vector<32x12xbf16>
    %cst_10 = arith.constant dense<0.000000e+00> : vector<128x12xf32>
    %12 = tpu.matmul %1, %11, %cst_10 {dimension_numbers = #tpu.dot_dimension_numbers<[1], [0], [0], [1], [0, 0, 1, 1], [], []>} : vector<128x32xbf16>, vector<32x12xbf16>, vector<128x12xf32> -> vector<128x12xf32>
    %c126_i32 = arith.constant 126 : i32
    %13 = tpu.dynamic_rotate %12 by %c126_i32 dim 0 : vector<128x12xf32>, i32 -> vector<128x12xf32>
    %14 = arith.addf %9, %13 : vector<128x12xf32>
    %c3 = arith.constant 3 : index
    %c0_11 = arith.constant 0 : index
    %c0_12 = arith.constant 0 : index
    %15 = vector.load %arg2[%c3, %c0_11, %c0_12] : memref<5x32x12xbf16, #tpu.memory_space<vmem>>, vector<1x32x12xbf16>
    %16 = vector.shape_cast %15 : vector<1x32x12xbf16> to vector<32x12xbf16>
    %cst_13 = arith.constant dense<0.000000e+00> : vector<128x12xf32>
    %17 = tpu.matmul %1, %16, %cst_13 {dimension_numbers = #tpu.dot_dimension_numbers<[1], [0], [0], [1], [0, 0, 1, 1], [], []>} : vector<128x32xbf16>, vector<32x12xbf16>, vector<128x12xf32> -> vector<128x12xf32>
    %c125_i32 = arith.constant 125 : i32
    %18 = tpu.dynamic_rotate %17 by %c125_i32 dim 0 : vector<128x12xf32>, i32 -> vector<128x12xf32>
    %19 = arith.addf %14, %18 : vector<128x12xf32>
    %c4 = arith.constant 4 : index
    %c0_14 = arith.constant 0 : index
    %c0_15 = arith.constant 0 : index
    %20 = vector.load %arg2[%c4, %c0_14, %c0_15] : memref<5x32x12xbf16, #tpu.memory_space<vmem>>, vector<1x32x12xbf16>
    %21 = vector.shape_cast %20 : vector<1x32x12xbf16> to vector<32x12xbf16>
    %cst_16 = arith.constant dense<0.000000e+00> : vector<128x12xf32>
    %22 = tpu.matmul %1, %21, %cst_16 {dimension_numbers = #tpu.dot_dimension_numbers<[1], [0], [0], [1], [0, 0, 1, 1], [], []>} : vector<128x32xbf16>, vector<32x12xbf16>, vector<128x12xf32> -> vector<128x12xf32>
    %c124_i32 = arith.constant 124 : i32
    %23 = tpu.dynamic_rotate %22 by %c124_i32 dim 0 : vector<128x12xf32>, i32 -> vector<128x12xf32>
    %24 = arith.addf %19, %23 : vector<128x12xf32>
    %c0_17 = arith.constant 0 : index
    %c0_18 = arith.constant 0 : index
    %25 = vector.load %arg4[%c0_17, %c0_18] : memref<128x12xf32, #tpu.memory_space<vmem>>, vector<128x12xf32>
    %26 = arith.addf %24, %25 : vector<128x12xf32>
    %27 = vector.shape_cast %26 : vector<128x12xf32> to vector<8x16x12xf32>
    %cst_19 = arith.constant dense<0xFF800000> : vector<8x12xf32>
    %28 = vector.multi_reduction <maximumf>, %27, %cst_19 [1] : vector<8x16x12xf32> to vector<8x12xf32>
    %c0_20 = arith.constant 0 : index
    %c0_21 = arith.constant 0 : index
    %29 = vector.load %arg3[%c0_20, %c0_21] : memref<1x12xf32, #tpu.memory_space<vmem>>, vector<1x12xf32>
    %30 = vector.broadcast %29 : vector<1x12xf32> to vector<8x12xf32>
    %31 = arith.addf %28, %30 : vector<8x12xf32>
    %32 = arith.truncf %31 : vector<8x12xf32> to vector<8x12xbf16>
    %c0_22 = arith.constant 0 : index
    %c0_23 = arith.constant 0 : index
    %33 = vector.load %arg5[%c0_22, %c0_23] : memref<12x9xbf16, #tpu.memory_space<vmem>>, vector<12x9xbf16>
    %cst_24 = arith.constant dense<0.000000e+00> : vector<8x9xf32>
    %34 = tpu.matmul %32, %33, %cst_24 {dimension_numbers = #tpu.dot_dimension_numbers<[1], [0], [0], [1], [0, 0, 1, 1], [], []>} : vector<8x12xbf16>, vector<12x9xbf16>, vector<8x9xf32> -> vector<8x9xf32>
    %c0_25 = arith.constant 0 : index
    %c0_26 = arith.constant 0 : index
    %35 = vector.load %arg6[%c0_25, %c0_26] : memref<1x9xf32, #tpu.memory_space<vmem>>, vector<1x9xf32>
    %36 = vector.broadcast %35 : vector<1x9xf32> to vector<8x9xf32>
    %37 = arith.addf %34, %36 : vector<8x9xf32>
    %38 = vector.extract_strided_slice %37 {offsets = [0, 0], sizes = [8, 1], strides = [1, 1]} : vector<8x9xf32> to vector<8x1xf32>
    %39 = arith.negf %38 : vector<8x1xf32>
    %40 = math.exp %39 : vector<8x1xf32>
    %cst_27 = arith.constant 1.000000e+00 : f32
    %41 = vector.broadcast %cst_27 : f32 to vector<8x1xf32>
    %42 = arith.addf %41, %40 : vector<8x1xf32>
    %43 = arith.divf %41, %42 : vector<8x1xf32>
    %44 = vector.extract_strided_slice %37 {offsets = [0, 1], sizes = [8, 8], strides = [1, 1]} : vector<8x9xf32> to vector<8x8xf32>
    %45 = tpu.concatenate %43, %44, %31 in 1 : vector<8x1xf32>, vector<8x8xf32>, vector<8x12xf32> -> vector<8x21xf32>
    %c0_28 = arith.constant 0 : index
    %c0_29 = arith.constant 0 : index
    %46 = vector.load %arg7[%c0_28, %c0_29] : memref<8x21xf32, #tpu.memory_space<vmem>>, vector<8x21xf32>
    tpu.vector_store %arg7[%c0_28, %c0_29], %45 {strides = array<i32>} : memref<8x21xf32, #tpu.memory_space<vmem>>, vector<8x21xf32>,
    return
  }
  func.func @transform_0(%arg0: i32) -> (i32, i32, i32) {
    %c0_i32 = arith.constant 0 : i32
    %c0_i32_0 = arith.constant 0 : i32
    %c0_i32_1 = arith.constant 0 : i32
    return %arg0, %c0_i32, %c0_i32_0 : i32, i32, i32
  }
  func.func @transform_1(%arg0: i32) -> (i32, i32, i32) {
    %c0_i32 = arith.constant 0 : i32
    %c0_i32_0 = arith.constant 0 : i32
    %c0_i32_1 = arith.constant 0 : i32
    %c0_i32_2 = arith.constant 0 : i32
    return %c0_i32, %c0_i32_0, %c0_i32_1 : i32, i32, i32
  }
  func.func @transform_2(%arg0: i32) -> (i32, i32) {
    %c0_i32 = arith.constant 0 : i32
    %c0_i32_0 = arith.constant 0 : i32
    %c0_i32_1 = arith.constant 0 : i32
    return %c0_i32, %c0_i32_0 : i32, i32
  }
  func.func @transform_3(%arg0: i32) -> (i32, i32) {
    %c0_i32 = arith.constant 0 : i32
    %c0_i32_0 = arith.constant 0 : i32
    %c0_i32_1 = arith.constant 0 : i32
    return %c0_i32, %c0_i32_0 : i32, i32
  }
  func.func @transform_4(%arg0: i32) -> (i32, i32) {
    %c0_i32 = arith.constant 0 : i32
    %c0_i32_0 = arith.constant 0 : i32
    %c0_i32_1 = arith.constant 0 : i32
    return %c0_i32, %c0_i32_0 : i32, i32
  }
  func.func @transform_5(%arg0: i32) -> (i32, i32) {
    %c0_i32 = arith.constant 0 : i32
    %c0_i32_0 = arith.constant 0 : i32
    %c0_i32_1 = arith.constant 0 : i32
    return %c0_i32, %c0_i32_0 : i32, i32
  }
  func.func @transform_6(%arg0: i32) -> (i32, i32) {
    %c0_i32 = arith.constant 0 : i32
    %c0_i32_0 = arith.constant 0 : i32
    return %arg0, %c0_i32 : i32, i32
  }
}

</mosaic_0001>

<llo_original>
// kernel: tpu_custom_call.1
$region0: #{tpu_custom_call.1}
  #allocation0 [shape = 'u32[]', space=smem, size = 0x4, offset = 0x4, fixed_abs, tag = 'smem constant byte address 0x4 - core index']
  #allocation1 [shape = 'u32[144,128]{1,0:T(1,128)}', space=vmem, size = 0x12000, scoped, tag = 'internal scratch']
  %s0 = inlined_call_operand.vmem [shape: bf16[8,16,32], index: 0, kind: input, shape index: {}]
  %s1 = inlined_call_operand.vmem [shape: bf16[5,32,12], index: 1, kind: input, shape index: {}]
  %s2 = inlined_call_operand.vmem [shape: f32[1,12], index: 2, kind: input, shape index: {}]
  %s3 = inlined_call_operand.vmem [shape: f32[128,12], index: 3, kind: input, shape index: {}]
  %s4 = inlined_call_operand.vmem [shape: bf16[12,9], index: 4, kind: input, shape index: {}]
  %s5 = inlined_call_operand.vmem [shape: f32[1,9], index: 5, kind: input, shape index: {}]
  %s6 = inlined_call_operand.hbm [shape: f32[8,21], index: 6, kind: output, shape index: {}]
  %s7 = sld [smem:[#allocation0]]
  $region34: #{tpu_custom_call.1} parent=0
    _
  %s9 = ssub.s32 1, %s7
  %s10 = scalar_select 0, %s9, %s7
  $region1: #{tpu_custom_call.1} parent=0
    #allocation2 [shape = 'u8[4096]{0}', space=vmem, size = 0x1000, scoped, tag = 'output window, operand 0, single buffered']
    #allocation3 [shape = 's32[1]{0}', space=sflag, size = 0x4, scoped, tag = 'scoped memory for tpu_custom_call.1']
    %11 = vsyncpa [#allocation3], 0
    // Predicated region
    $region2: #{tpu_custom_call.1} parent=1 // pred_check
      _
    $region3: #{tpu_custom_call.1} parent=1 // pred_check_branch
      %13 = sbr.rel (0) target = $region5
    $region4: #{tpu_custom_call.1} parent=1 // pred_region
      _
    $region5: #{tpu_custom_call.1} parent=1 // pred_fallthru
      _
    // Predicated region
    $region6: #{tpu_custom_call.1} parent=1 // pred_check
      _
    $region7: #{tpu_custom_call.1} parent=1 // pred_check_branch
      %15 = sbr.rel (0) target = $region9
    $region8: #{tpu_custom_call.1} parent=1 // pred_region
      _
    $region9: #{tpu_custom_call.1} parent=1 // pred_fallthru
      _
    // Predicated region
    $region10: #{tpu_custom_call.1} parent=1 // pred_check
      _
    $region11: #{tpu_custom_call.1} parent=1 // pred_check_branch
      %17 = sbr.rel (0) target = $region13
    $region12: #{tpu_custom_call.1} parent=1 // pred_region
      _
    $region13: #{tpu_custom_call.1} parent=1 // pred_fallthru
      _
    // Predicated region
    $region14: #{tpu_custom_call.1} parent=1 // pred_check
      _
    $region15: #{tpu_custom_call.1} parent=1 // pred_check_branch
      %19 = sbr.rel (0) target = $region17
    $region16: #{tpu_custom_call.1} parent=1 // pred_region
      _
    $region17: #{tpu_custom_call.1} parent=1 // pred_fallthru
      _
    // Predicated region
    $region18: #{tpu_custom_call.1} parent=1 // pred_check
      _
    $region19: #{tpu_custom_call.1} parent=1 // pred_check_branch
      %21 = sbr.rel (0) target = $region21
    $region20: #{tpu_custom_call.1} parent=1 // pred_region
      _
    $region21: #{tpu_custom_call.1} parent=1 // pred_fallthru
      _
    // Predicated region
    $region22: #{tpu_custom_call.1} parent=1 // pred_check
      _
    $region23: #{tpu_custom_call.1} parent=1 // pred_check_branch
      %23 = sbr.rel (0) target = $region25
    $region24: #{tpu_custom_call.1} parent=1 // pred_region
      _
    $region25: #{tpu_custom_call.1} parent=1 // pred_fallthru
      _
    %v25 = vld [vmem:[%s0] sm:$0xf]
    %v26 = vld [vmem:[%s0 + $0x4] sm:$0xf]
    %v27 = vld [vmem:[%s0 + $0x8] sm:$0xf]
    %v28 = vld [vmem:[%s0 + $0xc] sm:$0xf]
    %v29 = vld [vmem:[%s0 + $0x10] sm:$0xf]
    %v30 = vld [vmem:[%s0 + $0x14] sm:$0xf]
    %v31 = vld [vmem:[%s0 + $0x18] sm:$0xf]
    %v32 = vld [vmem:[%s0 + $0x1c] sm:$0xf]
    %v33 = vld [vmem:[%s0 + $0x20] sm:$0xf]
    %v34 = vld [vmem:[%s0 + $0x24] sm:$0xf]
    %v35 = vld [vmem:[%s0 + $0x28] sm:$0xf]
    %v36 = vld [vmem:[%s0 + $0x2c] sm:$0xf]
    %v37 = vld [vmem:[%s0 + $0x30] sm:$0xf]
    %v38 = vld [vmem:[%s0 + $0x34] sm:$0xf]
    %v39 = vld [vmem:[%s0 + $0x38] sm:$0xf]
    %v40 = vld [vmem:[%s0 + $0x3c] sm:$0xf]
    %v41 = vld [vmem:[%s1] sm:$0xf]
    %v42 = vld [vmem:[%s1 + $0x4] sm:$0xf]
    %v43 = vld [vmem:[%s1 + $0x8] sm:$0xf]
    %v44 = vld [vmem:[%s1 + $0xc] sm:$0xf]
    %s45 = scalar_lea.vmem %s1, 16
    %v46 = vld [vmem:[%s45] sm:$0xf]
    %v47 = vld [vmem:[%s45 + $0x4] sm:$0xf]
    %v48 = vld [vmem:[%s45 + $0x8] sm:$0xf]
    %v49 = vld [vmem:[%s45 + $0xc] sm:$0xf]
    %v66 = vunpack.c.l.b16 %v25
    %v67 = vunpack.c.l.b16 %v26
    %v68 = vunpack.c.l.b16 %v27
    %v69 = vunpack.c.l.b16 %v28
    %v70 = vunpack.c.l.b16 %v29
    %v71 = vunpack.c.l.b16 %v30
    %v72 = vunpack.c.l.b16 %v31
    %v73 = vunpack.c.l.b16 %v32
    %v74 = vunpack.c.l.b16 %v33
    %v75 = vunpack.c.l.b16 %v34
    %v76 = vunpack.c.l.b16 %v35
    %v77 = vunpack.c.l.b16 %v36
    %v78 = vunpack.c.l.b16 %v37
    %v79 = vunpack.c.l.b16 %v38
    %v80 = vunpack.c.l.b16 %v39
    %v81 = vunpack.c.l.b16 %v40
    %v82 = vpack.c.b16 %v67, %v66
    %v83 = vpack.c.b16 %v69, %v68
    %v84 = vpack.c.b16 %v71, %v70
    %v85 = vpack.c.b16 %v73, %v72
    %v86 = vpack.c.b16 %v75, %v74
    %v87 = vpack.c.b16 %v77, %v76
    %v88 = vpack.c.b16 %v79, %v78
    %v89 = vpack.c.b16 %v81, %v80
    %v94 = vunpack.c.l.b16 %v46
    %v95 = vunpack.c.l.b16 %v47
    %v96 = vunpack.c.l.b16 %v48
    %v97 = vunpack.c.l.b16 %v49
    %v98 = vpack.c.b16 %v95, %v94
    %v99 = vpack.c.b16 %v97, %v96
    %vm102 = vcmask 261120
    %v104 = vsel %vm102, %v82, 0
    %v107 = vsel %vm102, %v83, 0
    %v110 = vsel %vm102, %v84, 0
    %v113 = vsel %vm102, %v85, 0
    %v116 = vsel %vm102, %v86, 0
    %v119 = vsel %vm102, %v87, 0
    %v122 = vsel %vm102, %v88, 0
    %v125 = vsel %vm102, %v89, 0
    %127 = vmatprep.subr.bf16.mxu0 0
    %128 = vmatpush1.bf16.msra.mxu0 0
    %129 = vmatprep.subr.bf16.mxu0 0
    %130 = vmatpush1.bf16.msra.mxu0 0
    %131 = vmatprep.subr.bf16.mxu0 0
    %132 = vmatpush1.bf16.msra.mxu0 0
    %133 = vmatprep.subr.bf16.mxu0 0
    %134 = vmatpush1.bf16.msra.mxu0 0
    %135 = vmatprep.subr.bf16.mxu0 0
    %136 = vmatpush1.bf16.msra.mxu0 0
    %137 = vmatprep.subr.bf16.mxu0 0
    %138 = vmatpush1.bf16.msra.mxu0 0
    %139 = vmatprep.subr.bf16.mxu0 0
    %140 = vmatpush1.bf16.msra.mxu0 %v99
    %141 = vmatprep.subr.bf16.mxu0 0
    %142 = vmatpush1.bf16.msra.mxu0 %v98
    %143 = vmatprep.subr.bf16.mxu0 0
    %144 = vmatpush2.bf16.msra.mxu0 0
    %145 = vmatprep.subr.bf16.mxu0 0
    %146 = vmatpush2.bf16.msra.mxu0 0
    %147 = vmatprep.subr.bf16.mxu0 0
    %148 = vmatpush2.bf16.msra.mxu0 0
    %149 = vmatprep.subr.bf16.mxu0 0
    %150 = vmatpush2.bf16.msra.mxu0 0
    %151 = vmatprep.subr.bf16.mxu0 0
    %152 = vmatpush2.bf16.msra.mxu0 0
    %153 = vmatprep.subr.bf16.mxu0 0
    %154 = vmatpush2.bf16.msra.mxu0 0
    %155 = vmatprep.subr.bf16.mxu0 0
    %156 = vmatpush2.bf16.msra.mxu0 0
    %157 = vmatprep.subr.bf16.mxu0 0
    %158 = vmatpush2.bf16.msra.mxu0 0
    %159 = vmatprep.mubr.bf16.mxu0 0
    %160 = vmatmul.mubr.bf16.gmra.mxu0 %v104
    %v161 = vpop.f32.mrf.mxu0
    %v162 = vadd.f32 0.0, %v161
    %v163 = vpop.f32.mrf.mxu0
    %v164 = vpop.f32.mrf.mxu0
    %v165 = vadd.f32 0.0, %v164
    %v166 = vpop.f32.mrf.mxu0
    %167 = vmatprep.mubr.bf16.mxu0 0
    %168 = vmatmul.mubr.bf16.gmra.mxu0 %v107
    %v169 = vpop.f32.mrf.mxu0
    %v170 = vadd.f32 0.0, %v169
    %v171 = vpop.f32.mrf.mxu0
    %v172 = vpop.f32.mrf.mxu0
    %v173 = vadd.f32 0.0, %v172
    %v174 = vpop.f32.mrf.mxu0
    %175 = vmatprep.mubr.bf16.mxu0 0
    %176 = vmatmul.mubr.bf16.gmra.mxu0 %v110
    %v177 = vpop.f32.mrf.mxu0
    %v178 = vadd.f32 0.0, %v177
    %v179 = vpop.f32.mrf.mxu0
    %v180 = vpop.f32.mrf.mxu0
    %v181 = vadd.f32 0.0, %v180
    %v182 = vpop.f32.mrf.mxu0
    %183 = vmatprep.mubr.bf16.mxu0 0
    %184 = vmatmul.mubr.bf16.gmra.mxu0 %v113
    %v185 = vpop.f32.mrf.mxu0
    %v186 = vadd.f32 0.0, %v185
    %v187 = vpop.f32.mrf.mxu0
    %v188 = vpop.f32.mrf.mxu0
    %v189 = vadd.f32 0.0, %v188
    %v190 = vpop.f32.mrf.mxu0
    %191 = vmatprep.mubr.bf16.mxu0 0
    %192 = vmatmul.mubr.bf16.gmra.mxu0 %v116
    %v193 = vpop.f32.mrf.mxu0
    %v194 = vadd.f32 0.0, %v193
    %v195 = vpop.f32.mrf.mxu0
    %v196 = vpop.f32.mrf.mxu0
    %v197 = vadd.f32 0.0, %v196
    %v198 = vpop.f32.mrf.mxu0
    %199 = vmatprep.mubr.bf16.mxu0 0
    %200 = vmatmul.mubr.bf16.gmra.mxu0 %v119
    %v201 = vpop.f32.mrf.mxu0
    %v202 = vadd.f32 0.0, %v201
    %v203 = vpop.f32.mrf.mxu0
    %v204 = vpop.f32.mrf.mxu0
    %v205 = vadd.f32 0.0, %v204
    %v206 = vpop.f32.mrf.mxu0
    %207 = vmatprep.mubr.bf16.mxu0 0
    %208 = vmatmul.mubr.bf16.gmra.mxu0 %v122
    %v209 = vpop.f32.mrf.mxu0
    %v210 = vadd.f32 0.0, %v209
    %v211 = vpop.f32.mrf.mxu0
    %v212 = vpop.f32.mrf.mxu0
    %v213 = vadd.f32 0.0, %v212
    %v214 = vpop.f32.mrf.mxu0
    %215 = vmatprep.mubr.bf16.mxu0 0
    %216 = vmatmul.mubr.bf16.gmra.mxu0 %v125
    %v217 = vpop.f32.mrf.mxu0
    %v218 = vadd.f32 0.0, %v217
    %v219 = vpop.f32.mrf.mxu0
    %v220 = vpop.f32.mrf.mxu0
    %v221 = vadd.f32 0.0, %v220
    %v222 = vpop.f32.mrf.mxu0
    %223 = vdwg.mxu0
    %v224 = vrot.slane %v162, 1
    %v225 = vrot.slane %v165, 1
    %v226 = vrot.slane %v170, 1
    %v227 = vrot.slane %v173, 1
    %v228 = vrot.slane %v178, 1
    %v229 = vrot.slane %v181, 1
    %v230 = vrot.slane %v186, 1
    %v231 = vrot.slane %v189, 1
    %v232 = vrot.slane %v194, 1
    %v233 = vrot.slane %v197, 1
    %v234 = vrot.slane %v202, 1
    %v235 = vrot.slane %v205, 1
    %v236 = vrot.slane %v210, 1
    %v237 = vrot.slane %v213, 1
    %v238 = vrot.slane %v218, 1
    %v239 = vrot.slane %v221, 1
    %v240 = vlaneseq
    %v241 = vshrl.u32 %v240, 7
    %vm242 = vcmp.lt.s32.totalorder %v241, 7
    %v243 = vsel %vm242, %v238, %v239
    %v244 = vsel %vm242, %v237, %v238
    %v245 = vsel %vm242, %v236, %v237
    %v246 = vsel %vm242, %v235, %v236
    %v247 = vsel %vm242, %v234, %v235
    %v248 = vsel %vm242, %v233, %v234
    %v249 = vsel %vm242, %v232, %v233
    %v250 = vsel %vm242, %v231, %v232
    %v251 = vsel %vm242, %v230, %v231
    %v252 = vsel %vm242, %v229, %v230
    %v253 = vsel %vm242, %v228, %v229
    %v254 = vsel %vm242, %v227, %v228
    %v255 = vsel %vm242, %v226, %v227
    %v256 = vsel %vm242, %v225, %v226
    %v257 = vsel %vm242, %v224, %v225
    %v258 = vsel %vm242, %v239, %v224
    %v263 = vunpack.c.l.b16 %v41
    %v264 = vunpack.c.l.b16 %v42
    %v265 = vunpack.c.l.b16 %v43
    %v266 = vunpack.c.l.b16 %v44
    %v267 = vpack.c.b16 %v264, %v263
    %v268 = vpack.c.b16 %v266, %v265
    %271 = vmatprep.subr.bf16.mxu0 0
    %272 = vmatpush1.bf16.msra.mxu0 0
    %273 = vmatprep.subr.bf16.mxu0 0
    %274 = vmatpush1.bf16.msra.mxu0 0
    %275 = vmatprep.subr.bf16.mxu0 0
    %276 = vmatpush1.bf16.msra.mxu0 0
    %277 = vmatprep.subr.bf16.mxu0 0
    %278 = vmatpush1.bf16.msra.mxu0 0
    %279 = vmatprep.subr.bf16.mxu0 0
    %280 = vmatpush1.bf16.msra.mxu0 0
    %281 = vmatprep.subr.bf16.mxu0 0
    %282 = vmatpush1.bf16.msra.mxu0 0
    %283 = vmatprep.subr.bf16.mxu0 0
    %284 = vmatpush1.bf16.msra.mxu0 %v268
    %285 = vmatprep.subr.bf16.mxu0 0
    %286 = vmatpush1.bf16.msra.mxu0 %v267
    %287 = vmatprep.subr.bf16.mxu0 0
    %288 = vmatpush2.bf16.msra.mxu0 0
    %289 = vmatprep.subr.bf16.mxu0 0
    %290 = vmatpush2.bf16.msra.mxu0 0
    %291 = vmatprep.subr.bf16.mxu0 0
    %292 = vmatpush2.bf16.msra.mxu0 0
    %293 = vmatprep.subr.bf16.mxu0 0
    %294 = vmatpush2.bf16.msra.mxu0 0
    %295 = vmatprep.subr.bf16.mxu0 0
    %296 = vmatpush2.bf16.msra.mxu0 0
    %297 = vmatprep.subr.bf16.mxu0 0
    %298 = vmatpush2.bf16.msra.mxu0 0
    %299 = vmatprep.subr.bf16.mxu0 0
    %300 = vmatpush2.bf16.msra.mxu0 0
    %301 = vmatprep.subr.bf16.mxu0 0
    %302 = vmatpush2.bf16.msra.mxu0 0
    %303 = vmatprep.mubr.bf16.mxu0 0
    %304 = vmatmul.mubr.bf16.gmra.mxu0 %v104
    %v305 = vpop.f32.mrf.mxu0
    %v306 = vadd.f32 %v257, %v305
    %v307 = vpop.f32.mrf.mxu0
    %v308 = vpop.f32.mrf.mxu0
    %v309 = vadd.f32 %v256, %v308
    %v310 = vpop.f32.mrf.mxu0
    %311 = vmatprep.mubr.bf16.mxu0 0
    %312 = vmatmul.mubr.bf16.gmra.mxu0 %v107
    %v313 = vpop.f32.mrf.mxu0
    %v314 = vadd.f32 %v255, %v313
    %v315 = vpop.f32.mrf.mxu0
    %v316 = vpop.f32.mrf.mxu0
    %v317 = vadd.f32 %v254, %v316
    %v318 = vpop.f32.mrf.mxu0
    %319 = vmatprep.mubr.bf16.mxu0 0
    %320 = vmatmul.mubr.bf16.gmra.mxu0 %v110
    %v321 = vpop.f32.mrf.mxu0
    %v322 = vadd.f32 %v253, %v321
    %v323 = vpop.f32.mrf.mxu0
    %v324 = vpop.f32.mrf.mxu0
    %v325 = vadd.f32 %v252, %v324
    %v326 = vpop.f32.mrf.mxu0
    %327 = vmatprep.mubr.bf16.mxu0 0
    %328 = vmatmul.mubr.bf16.gmra.mxu0 %v113
    %v329 = vpop.f32.mrf.mxu0
    %v330 = vadd.f32 %v251, %v329
    %v331 = vpop.f32.mrf.mxu0
    %v332 = vpop.f32.mrf.mxu0
    %v333 = vadd.f32 %v250, %v332
    %v334 = vpop.f32.mrf.mxu0
    %335 = vmatprep.mubr.bf16.mxu0 0
    %336 = vmatmul.mubr.bf16.gmra.mxu0 %v116
    %v337 = vpop.f32.mrf.mxu0
    %v338 = vadd.f32 %v249, %v337
    %v339 = vpop.f32.mrf.mxu0
    %v340 = vpop.f32.mrf.mxu0
    %v341 = vadd.f32 %v248, %v340
    %v342 = vpop.f32.mrf.mxu0
    %343 = vmatprep.mubr.bf16.mxu0 0
    %344 = vmatmul.mubr.bf16.gmra.mxu0 %v119
    %v345 = vpop.f32.mrf.mxu0
    %v346 = vadd.f32 %v247, %v345
    %v347 = vpop.f32.mrf.mxu0
    %v348 = vpop.f32.mrf.mxu0
    %v349 = vadd.f32 %v246, %v348
    %v350 = vpop.f32.mrf.mxu0
    %351 = vmatprep.mubr.bf16.mxu0 0
    %352 = vmatmul.mubr.bf16.gmra.mxu0 %v122
    %v353 = vpop.f32.mrf.mxu0
    %v354 = vadd.f32 %v245, %v353
    %v355 = vpop.f32.mrf.mxu0
    %v356 = vpop.f32.mrf.mxu0
    %v357 = vadd.f32 %v244, %v356
    %v358 = vpop.f32.mrf.mxu0
    %359 = vmatprep.mubr.bf16.mxu0 0
    %360 = vmatmul.mubr.bf16.gmra.mxu0 %v125
    %v361 = vpop.f32.mrf.mxu0
    %v362 = vadd.f32 %v243, %v361
    %v363 = vpop.f32.mrf.mxu0
    %v364 = vpop.f32.mrf.mxu0
    %v365 = vadd.f32 %v258, %v364
    %v366 = vpop.f32.mrf.mxu0
    %367 = vdwg.mxu0
    %s368 = scalar_lea.vmem %s1, 32
    %v369 = vld [vmem:[%s368] sm:$0xf]
    %v370 = vld [vmem:[%s368 + $0x4] sm:$0xf]
    %v371 = vld [vmem:[%s368 + $0x8] sm:$0xf]
    %v372 = vld [vmem:[%s368 + $0xc] sm:$0xf]
    %v377 = vunpack.c.l.b16 %v369
    %v378 = vunpack.c.l.b16 %v370
    %v379 = vunpack.c.l.b16 %v371
    %v380 = vunpack.c.l.b16 %v372
    %v381 = vpack.c.b16 %v378, %v377
    %v382 = vpack.c.b16 %v380, %v379
    %385 = vmatprep.subr.bf16.mxu0 0
    %386 = vmatpush1.bf16.msra.mxu0 0
    %387 = vmatprep.subr.bf16.mxu0 0
    %388 = vmatpush1.bf16.msra.mxu0 0
    %389 = vmatprep.subr.bf16.mxu0 0
    %390 = vmatpush1.bf16.msra.mxu0 0
    %391 = vmatprep.subr.bf16.mxu0 0
    %392 = vmatpush1.bf16.msra.mxu0 0
    %393 = vmatprep.subr.bf16.mxu0 0
    %394 = vmatpush1.bf16.msra.mxu0 0
    %395 = vmatprep.subr.bf16.mxu0 0
    %396 = vmatpush1.bf16.msra.mxu0 0
    %397 = vmatprep.subr.bf16.mxu0 0
    %398 = vmatpush1.bf16.msra.mxu0 %v382
    %399 = vmatprep.subr.bf16.mxu0 0
    %400 = vmatpush1.bf16.msra.mxu0 %v381
    %401 = vmatprep.subr.bf16.mxu0 0
    %402 = vmatpush2.bf16.msra.mxu0 0
    %403 = vmatprep.subr.bf16.mxu0 0
    %404 = vmatpush2.bf16.msra.mxu0 0
    %405 = vmatprep.subr.bf16.mxu0 0
    %406 = vmatpush2.bf16.msra.mxu0 0
    %407 = vmatprep.subr.bf16.mxu0 0
    %408 = vmatpush2.bf16.msra.mxu0 0
    %409 = vmatprep.subr.bf16.mxu0 0
    %410 = vmatpush2.bf16.msra.mxu0 0
    %411 = vmatprep.subr.bf16.mxu0 0
    %412 = vmatpush2.bf16.msra.mxu0 0
    %413 = vmatprep.subr.bf16.mxu0 0
    %414 = vmatpush2.bf16.msra.mxu0 0
    %415 = vmatprep.subr.bf16.mxu0 0
    %416 = vmatpush2.bf16.msra.mxu0 0
    %417 = vmatprep.mubr.bf16.mxu0 0
    %418 = vmatmul.mubr.bf16.gmra.mxu0 %v104
    %v419 = vpop.f32.mrf.mxu0
    %v420 = vadd.f32 0.0, %v419
    %v421 = vpop.f32.mrf.mxu0
    %v422 = vpop.f32.mrf.mxu0
    %v423 = vadd.f32 0.0, %v422
    %v424 = vpop.f32.mrf.mxu0
    %425 = vmatprep.mubr.bf16.mxu0 0
    %426 = vmatmul.mubr.bf16.gmra.mxu0 %v107
    %v427 = vpop.f32.mrf.mxu0
    %v428 = vadd.f32 0.0, %v427
    %v429 = vpop.f32.mrf.mxu0
    %v430 = vpop.f32.mrf.mxu0
    %v431 = vadd.f32 0.0, %v430
    %v432 = vpop.f32.mrf.mxu0
    %433 = vmatprep.mubr.bf16.mxu0 0
    %434 = vmatmul.mubr.bf16.gmra.mxu0 %v110
    %v435 = vpop.f32.mrf.mxu0
    %v436 = vadd.f32 0.0, %v435
    %v437 = vpop.f32.mrf.mxu0
    %v438 = vpop.f32.mrf.mxu0
    %v439 = vadd.f32 0.0, %v438
    %v440 = vpop.f32.mrf.mxu0
    %441 = vmatprep.mubr.bf16.mxu0 0
    %442 = vmatmul.mubr.bf16.gmra.mxu0 %v113
    %v443 = vpop.f32.mrf.mxu0
    %v444 = vadd.f32 0.0, %v443
    %v445 = vpop.f32.mrf.mxu0
    %v446 = vpop.f32.mrf.mxu0
    %v447 = vadd.f32 0.0, %v446
    %v448 = vpop.f32.mrf.mxu0
    %449 = vmatprep.mubr.bf16.mxu0 0
    %450 = vmatmul.mubr.bf16.gmra.mxu0 %v116
    %v451 = vpop.f32.mrf.mxu0
    %v452 = vadd.f32 0.0, %v451
    %v453 = vpop.f32.mrf.mxu0
    %v454 = vpop.f32.mrf.mxu0
    %v455 = vadd.f32 0.0, %v454
    %v456 = vpop.f32.mrf.mxu0
    %457 = vmatprep.mubr.bf16.mxu0 0
    %458 = vmatmul.mubr.bf16.gmra.mxu0 %v119
    %v459 = vpop.f32.mrf.mxu0
    %v460 = vadd.f32 0.0, %v459
    %v461 = vpop.f32.mrf.mxu0
    %v462 = vpop.f32.mrf.mxu0
    %v463 = vadd.f32 0.0, %v462
    %v464 = vpop.f32.mrf.mxu0
    %465 = vmatprep.mubr.bf16.mxu0 0
    %466 = vmatmul.mubr.bf16.gmra.mxu0 %v122
    %v467 = vpop.f32.mrf.mxu0
    %v468 = vadd.f32 0.0, %v467
    %v469 = vpop.f32.mrf.mxu0
    %v470 = vpop.f32.mrf.mxu0
    %v471 = vadd.f32 0.0, %v470
    %v472 = vpop.f32.mrf.mxu0
    %473 = vmatprep.mubr.bf16.mxu0 0
    %474 = vmatmul.mubr.bf16.gmra.mxu0 %v125
    %v475 = vpop.f32.mrf.mxu0
    %v476 = vadd.f32 0.0, %v475
    %v477 = vpop.f32.mrf.mxu0
    %v478 = vpop.f32.mrf.mxu0
    %v479 = vadd.f32 0.0, %v478
    %v480 = vpop.f32.mrf.mxu0
    %481 = vdwg.mxu0
    %v482 = vrot.slane %v420, 2
    %v483 = vrot.slane %v423, 2
    %v484 = vrot.slane %v428, 2
    %v485 = vrot.slane %v431, 2
    %v486 = vrot.slane %v436, 2
    %v487 = vrot.slane %v439, 2
    %v488 = vrot.slane %v444, 2
    %v489 = vrot.slane %v447, 2
    %v490 = vrot.slane %v452, 2
    %v491 = vrot.slane %v455, 2
    %v492 = vrot.slane %v460, 2
    %v493 = vrot.slane %v463, 2
    %v494 = vrot.slane %v468, 2
    %v495 = vrot.slane %v471, 2
    %v496 = vrot.slane %v476, 2
    %v497 = vrot.slane %v479, 2
    %vm498 = vcmp.lt.s32.totalorder %v241, 6
    %v499 = vsel %vm498, %v496, %v497
    %v500 = vsel %vm498, %v495, %v496
    %v501 = vsel %vm498, %v494, %v495
    %v502 = vsel %vm498, %v493, %v494
    %v503 = vsel %vm498, %v492, %v493
    %v504 = vsel %vm498, %v491, %v492
    %v505 = vsel %vm498, %v490, %v491
    %v506 = vsel %vm498, %v489, %v490
    %v507 = vsel %vm498, %v488, %v489
    %v508 = vsel %vm498, %v487, %v488
    %v509 = vsel %vm498, %v486, %v487
    %v510 = vsel %vm498, %v485, %v486
    %v511 = vsel %vm498, %v484, %v485
    %v512 = vsel %vm498, %v483, %v484
    %v513 = vsel %vm498, %v482, %v483
    %v514 = vsel %vm498, %v497, %v482
    %v515 = vadd.f32 %v306, %v513
    %v516 = vadd.f32 %v309, %v512
    %v517 = vadd.f32 %v314, %v511
    %v518 = vadd.f32 %v317, %v510
    %v519 = vadd.f32 %v322, %v509
    %v520 = vadd.f32 %v325, %v508
    %v521 = vadd.f32 %v330, %v507
    %v522 = vadd.f32 %v333, %v506
    %v523 = vadd.f32 %v338, %v505
    %v524 = vadd.f32 %v341, %v504
    %v525 = vadd.f32 %v346, %v503
    %v526 = vadd.f32 %v349, %v502
    %v527 = vadd.f32 %v354, %v501
    %v528 = vadd.f32 %v357, %v500
    %v529 = vadd.f32 %v362, %v499
    %v530 = vadd.f32 %v365, %v514
    %s531 = scalar_lea.vmem %s1, 48
    %v532 = vld [vmem:[%s531] sm:$0xf]
    %v533 = vld [vmem:[%s531 + $0x4] sm:$0xf]
    %v534 = vld [vmem:[%s531 + $0x8] sm:$0xf]
    %v535 = vld [vmem:[%s531 + $0xc] sm:$0xf]
    %v540 = vunpack.c.l.b16 %v532
    %v541 = vunpack.c.l.b16 %v533
    %v542 = vunpack.c.l.b16 %v534
    %v543 = vunpack.c.l.b16 %v535
    %v544 = vpack.c.b16 %v541, %v540
    %v545 = vpack.c.b16 %v543, %v542
    %548 = vmatprep.subr.bf16.mxu0 0
    %549 = vmatpush1.bf16.msra.mxu0 0
    %550 = vmatprep.subr.bf16.mxu0 0
    %551 = vmatpush1.bf16.msra.mxu0 0
    %552 = vmatprep.subr.bf16.mxu0 0
    %553 = vmatpush1.bf16.msra.mxu0 0
    %554 = vmatprep.subr.bf16.mxu0 0
    %555 = vmatpush1.bf16.msra.mxu0 0
    %556 = vmatprep.subr.bf16.mxu0 0
    %557 = vmatpush1.bf16.msra.mxu0 0
    %558 = vmatprep.subr.bf16.mxu0 0
    %559 = vmatpush1.bf16.msra.mxu0 0
    %560 = vmatprep.subr.bf16.mxu0 0
    %561 = vmatpush1.bf16.msra.mxu0 %v545
    %562 = vmatprep.subr.bf16.mxu0 0
    %563 = vmatpush1.bf16.msra.mxu0 %v544
    %564 = vmatprep.subr.bf16.mxu0 0
    %565 = vmatpush2.bf16.msra.mxu0 0
    %566 = vmatprep.subr.bf16.mxu0 0
    %567 = vmatpush2.bf16.msra.mxu0 0
    %568 = vmatprep.subr.bf16.mxu0 0
    %569 = vmatpush2.bf16.msra.mxu0 0
    %570 = vmatprep.subr.bf16.mxu0 0
    %571 = vmatpush2.bf16.msra.mxu0 0
    %572 = vmatprep.subr.bf16.mxu0 0
    %573 = vmatpush2.bf16.msra.mxu0 0
    %574 = vmatprep.subr.bf16.mxu0 0
    %575 = vmatpush2.bf16.msra.mxu0 0
    %576 = vmatprep.subr.bf16.mxu0 0
    %577 = vmatpush2.bf16.msra.mxu0 0
    %578 = vmatprep.subr.bf16.mxu0 0
    %579 = vmatpush2.bf16.msra.mxu0 0
    %580 = vmatprep.mubr.bf16.mxu0 0
    %581 = vmatmul.mubr.bf16.gmra.mxu0 %v104
    %v582 = vpop.f32.mrf.mxu0
    %v583 = vadd.f32 0.0, %v582
    %v584 = vpop.f32.mrf.mxu0
    %v585 = vpop.f32.mrf.mxu0
    %v586 = vadd.f32 0.0, %v585
    %v587 = vpop.f32.mrf.mxu0
    %588 = vmatprep.mubr.bf16.mxu0 0
    %589 = vmatmul.mubr.bf16.gmra.mxu0 %v107
    %v590 = vpop.f32.mrf.mxu0
    %v591 = vadd.f32 0.0, %v590
    %v592 = vpop.f32.mrf.mxu0
    %v593 = vpop.f32.mrf.mxu0
    %v594 = vadd.f32 0.0, %v593
    %v595 = vpop.f32.mrf.mxu0
    %596 = vmatprep.mubr.bf16.mxu0 0
    %597 = vmatmul.mubr.bf16.gmra.mxu0 %v110
    %v598 = vpop.f32.mrf.mxu0
    %v599 = vadd.f32 0.0, %v598
    %v600 = vpop.f32.mrf.mxu0
    %v601 = vpop.f32.mrf.mxu0
    %v602 = vadd.f32 0.0, %v601
    %v603 = vpop.f32.mrf.mxu0
    %604 = vmatprep.mubr.bf16.mxu0 0
    %605 = vmatmul.mubr.bf16.gmra.mxu0 %v113
    %v606 = vpop.f32.mrf.mxu0
    %v607 = vadd.f32 0.0, %v606
    %v608 = vpop.f32.mrf.mxu0
    %v609 = vpop.f32.mrf.mxu0
    %v610 = vadd.f32 0.0, %v609
    %v611 = vpop.f32.mrf.mxu0
    %612 = vmatprep.mubr.bf16.mxu0 0
    %613 = vmatmul.mubr.bf16.gmra.mxu0 %v116
    %v614 = vpop.f32.mrf.mxu0
    %v615 = vadd.f32 0.0, %v614
    %v616 = vpop.f32.mrf.mxu0
    %v617 = vpop.f32.mrf.mxu0
    %v618 = vadd.f32 0.0, %v617
    %v619 = vpop.f32.mrf.mxu0
    %620 = vmatprep.mubr.bf16.mxu0 0
    %621 = vmatmul.mubr.bf16.gmra.mxu0 %v119
    %v622 = vpop.f32.mrf.mxu0
    %v623 = vadd.f32 0.0, %v622
    %v624 = vpop.f32.mrf.mxu0
    %v625 = vpop.f32.mrf.mxu0
    %v626 = vadd.f32 0.0, %v625
    %v627 = vpop.f32.mrf.mxu0
    %628 = vmatprep.mubr.bf16.mxu0 0
    %629 = vmatmul.mubr.bf16.gmra.mxu0 %v122
    %v630 = vpop.f32.mrf.mxu0
    %v631 = vadd.f32 0.0, %v630
    %v632 = vpop.f32.mrf.mxu0
    %v633 = vpop.f32.mrf.mxu0
    %v634 = vadd.f32 0.0, %v633
    %v635 = vpop.f32.mrf.mxu0
    %636 = vmatprep.mubr.bf16.mxu0 0
    %637 = vmatmul.mubr.bf16.gmra.mxu0 %v125
    %v638 = vpop.f32.mrf.mxu0
    %v639 = vadd.f32 0.0, %v638
    %v640 = vpop.f32.mrf.mxu0
    %v641 = vpop.f32.mrf.mxu0
    %v642 = vadd.f32 0.0, %v641
    %v643 = vpop.f32.mrf.mxu0
    %644 = vdwg.mxu0
    %v645 = vrot.slane %v583, 3
    %v646 = vrot.slane %v586, 3
    %v647 = vrot.slane %v591, 3
    %v648 = vrot.slane %v594, 3
    %v649 = vrot.slane %v599, 3
    %v650 = vrot.slane %v602, 3
    %v651 = vrot.slane %v607, 3
    %v652 = vrot.slane %v610, 3
    %v653 = vrot.slane %v615, 3
    %v654 = vrot.slane %v618, 3
    %v655 = vrot.slane %v623, 3
    %v656 = vrot.slane %v626, 3
    %v657 = vrot.slane %v631, 3
    %v658 = vrot.slane %v634, 3
    %v659 = vrot.slane %v639, 3
    %v660 = vrot.slane %v642, 3
    %vm661 = vcmp.lt.s32.totalorder %v241, 5
    %v662 = vsel %vm661, %v659, %v660
    %v663 = vsel %vm661, %v658, %v659
    %v664 = vsel %vm661, %v657, %v658
    %v665 = vsel %vm661, %v656, %v657
    %v666 = vsel %vm661, %v655, %v656
    %v667 = vsel %vm661, %v654, %v655
    %v668 = vsel %vm661, %v653, %v654
    %v669 = vsel %vm661, %v652, %v653
    %v670 = vsel %vm661, %v651, %v652
    %v671 = vsel %vm661, %v650, %v651
    %v672 = vsel %vm661, %v649, %v650
    %v673 = vsel %vm661, %v648, %v649
    %v674 = vsel %vm661, %v647, %v648
    %v675 = vsel %vm661, %v646, %v647
    %v676 = vsel %vm661, %v645, %v646
    %v677 = vsel %vm661, %v660, %v645
    %v678 = vadd.f32 %v515, %v676
    %v679 = vadd.f32 %v516, %v675
    %v680 = vadd.f32 %v517, %v674
    %v681 = vadd.f32 %v518, %v673
    %v682 = vadd.f32 %v519, %v672
    %v683 = vadd.f32 %v520, %v671
    %v684 = vadd.f32 %v521, %v670
    %v685 = vadd.f32 %v522, %v669
    %v686 = vadd.f32 %v523, %v668
    %v687 = vadd.f32 %v524, %v667
    %v688 = vadd.f32 %v525, %v666
    %v689 = vadd.f32 %v526, %v665
    %v690 = vadd.f32 %v527, %v664
    %v691 = vadd.f32 %v528, %v663
    %v692 = vadd.f32 %v529, %v662
    %v693 = vadd.f32 %v530, %v677
    %s694 = scalar_lea.vmem %s1, 64
    %v695 = vld [vmem:[%s694] sm:$0xf]
    %v696 = vld [vmem:[%s694 + $0x4] sm:$0xf]
    %v697 = vld [vmem:[%s694 + $0x8] sm:$0xf]
    %v698 = vld [vmem:[%s694 + $0xc] sm:$0xf]
    %v703 = vunpack.c.l.b16 %v695
    %v704 = vunpack.c.l.b16 %v696
    %v705 = vunpack.c.l.b16 %v697
    %v706 = vunpack.c.l.b16 %v698
    %v707 = vpack.c.b16 %v704, %v703
    %v708 = vpack.c.b16 %v706, %v705
    %711 = vmatprep.subr.bf16.mxu0 0
    %712 = vmatpush1.bf16.msra.mxu0 0
    %713 = vmatprep.subr.bf16.mxu0 0
    %714 = vmatpush1.bf16.msra.mxu0 0
    %715 = vmatprep.subr.bf16.mxu0 0
    %716 = vmatpush1.bf16.msra.mxu0 0
    %717 = vmatprep.subr.bf16.mxu0 0
    %718 = vmatpush1.bf16.msra.mxu0 0
    %719 = vmatprep.subr.bf16.mxu0 0
    %720 = vmatpush1.bf16.msra.mxu0 0
    %721 = vmatprep.subr.bf16.mxu0 0
    %722 = vmatpush1.bf16.msra.mxu0 0
    %723 = vmatprep.subr.bf16.mxu0 0
    %724 = vmatpush1.bf16.msra.mxu0 %v708
    %725 = vmatprep.subr.bf16.mxu0 0
    %726 = vmatpush1.bf16.msra.mxu0 %v707
    %727 = vmatprep.subr.bf16.mxu0 0
    %728 = vmatpush2.bf16.msra.mxu0 0
    %729 = vmatprep.subr.bf16.mxu0 0
    %730 = vmatpush2.bf16.msra.mxu0 0
    %731 = vmatprep.subr.bf16.mxu0 0
    %732 = vmatpush2.bf16.msra.mxu0 0
    %733 = vmatprep.subr.bf16.mxu0 0
    %734 = vmatpush2.bf16.msra.mxu0 0
    %735 = vmatprep.subr.bf16.mxu0 0
    %736 = vmatpush2.bf16.msra.mxu0 0
    %737 = vmatprep.subr.bf16.mxu0 0
    %738 = vmatpush2.bf16.msra.mxu0 0
    %739 = vmatprep.subr.bf16.mxu0 0
    %740 = vmatpush2.bf16.msra.mxu0 0
    %741 = vmatprep.subr.bf16.mxu0 0
    %742 = vmatpush2.bf16.msra.mxu0 0
    %743 = vmatprep.mubr.bf16.mxu0 0
    %744 = vmatmul.mubr.bf16.gmra.mxu0 %v104
    %v745 = vpop.f32.mrf.mxu0
    %v746 = vadd.f32 0.0, %v745
    %v747 = vpop.f32.mrf.mxu0
    %v748 = vpop.f32.mrf.mxu0
    %v749 = vadd.f32 0.0, %v748
    %v750 = vpop.f32.mrf.mxu0
    %751 = vmatprep.mubr.bf16.mxu0 0
    %752 = vmatmul.mubr.bf16.gmra.mxu0 %v107
    %v753 = vpop.f32.mrf.mxu0
    %v754 = vadd.f32 0.0, %v753
    %v755 = vpop.f32.mrf.mxu0
    %v756 = vpop.f32.mrf.mxu0
    %v757 = vadd.f32 0.0, %v756
    %v758 = vpop.f32.mrf.mxu0
    %759 = vmatprep.mubr.bf16.mxu0 0
    %760 = vmatmul.mubr.bf16.gmra.mxu0 %v110
    %v761 = vpop.f32.mrf.mxu0
    %v762 = vadd.f32 0.0, %v761
    %v763 = vpop.f32.mrf.mxu0
    %v764 = vpop.f32.mrf.mxu0
    %v765 = vadd.f32 0.0, %v764
    %v766 = vpop.f32.mrf.mxu0
    %767 = vmatprep.mubr.bf16.mxu0 0
    %768 = vmatmul.mubr.bf16.gmra.mxu0 %v113
    %v769 = vpop.f32.mrf.mxu0
    %v770 = vadd.f32 0.0, %v769
    %v771 = vpop.f32.mrf.mxu0
    %v772 = vpop.f32.mrf.mxu0
    %v773 = vadd.f32 0.0, %v772
    %v774 = vpop.f32.mrf.mxu0
    %775 = vmatprep.mubr.bf16.mxu0 0
    %776 = vmatmul.mubr.bf16.gmra.mxu0 %v116
    %v777 = vpop.f32.mrf.mxu0
    %v778 = vadd.f32 0.0, %v777
    %v779 = vpop.f32.mrf.mxu0
    %v780 = vpop.f32.mrf.mxu0
    %v781 = vadd.f32 0.0, %v780
    %v782 = vpop.f32.mrf.mxu0
    %783 = vmatprep.mubr.bf16.mxu0 0
    %784 = vmatmul.mubr.bf16.gmra.mxu0 %v119
    %v785 = vpop.f32.mrf.mxu0
    %v786 = vadd.f32 0.0, %v785
    %v787 = vpop.f32.mrf.mxu0
    %v788 = vpop.f32.mrf.mxu0
    %v789 = vadd.f32 0.0, %v788
    %v790 = vpop.f32.mrf.mxu0
    %791 = vmatprep.mubr.bf16.mxu0 0
    %792 = vmatmul.mubr.bf16.gmra.mxu0 %v122
    %v793 = vpop.f32.mrf.mxu0
    %v794 = vadd.f32 0.0, %v793
    %v795 = vpop.f32.mrf.mxu0
    %v796 = vpop.f32.mrf.mxu0
    %v797 = vadd.f32 0.0, %v796
    %v798 = vpop.f32.mrf.mxu0
    %799 = vmatprep.mubr.bf16.mxu0 0
    %800 = vmatmul.mubr.bf16.gmra.mxu0 %v125
    %v801 = vpop.f32.mrf.mxu0
    %v802 = vadd.f32 0.0, %v801
    %v803 = vpop.f32.mrf.mxu0
    %v804 = vpop.f32.mrf.mxu0
    %v805 = vadd.f32 0.0, %v804
    %v806 = vpop.f32.mrf.mxu0
    %807 = vdwg.mxu0
    %v808 = vrot.slane %v746, 4
    %v809 = vrot.slane %v749, 4
    %v810 = vrot.slane %v754, 4
    %v811 = vrot.slane %v757, 4
    %v812 = vrot.slane %v762, 4
    %v813 = vrot.slane %v765, 4
    %v814 = vrot.slane %v770, 4
    %v815 = vrot.slane %v773, 4
    %v816 = vrot.slane %v778, 4
    %v817 = vrot.slane %v781, 4
    %v818 = vrot.slane %v786, 4
    %v819 = vrot.slane %v789, 4
    %v820 = vrot.slane %v794, 4
    %v821 = vrot.slane %v797, 4
    %v822 = vrot.slane %v802, 4
    %v823 = vrot.slane %v805, 4
    %vm824 = vcmp.lt.s32.totalorder %v241, 4
    %v825 = vsel %vm824, %v822, %v823
    %v826 = vsel %vm824, %v821, %v822
    %v827 = vsel %vm824, %v820, %v821
    %v828 = vsel %vm824, %v819, %v820
    %v829 = vsel %vm824, %v818, %v819
    %v830 = vsel %vm824, %v817, %v818
    %v831 = vsel %vm824, %v816, %v817
    %v832 = vsel %vm824, %v815, %v816
    %v833 = vsel %vm824, %v814, %v815
    %v834 = vsel %vm824, %v813, %v814
    %v835 = vsel %vm824, %v812, %v813
    %v836 = vsel %vm824, %v811, %v812
    %v837 = vsel %vm824, %v810, %v811
    %v838 = vsel %vm824, %v809, %v810
    %v839 = vsel %vm824, %v808, %v809
    %v840 = vsel %vm824, %v823, %v808
    %v841 = vadd.f32 %v678, %v839
    %v842 = vadd.f32 %v679, %v838
    %v843 = vadd.f32 %v680, %v837
    %v844 = vadd.f32 %v681, %v836
    %v845 = vadd.f32 %v682, %v835
    %v846 = vadd.f32 %v683, %v834
    %v847 = vadd.f32 %v684, %v833
    %v848 = vadd.f32 %v685, %v832
    %v849 = vadd.f32 %v686, %v831
    %v850 = vadd.f32 %v687, %v830
    %v851 = vadd.f32 %v688, %v829
    %v852 = vadd.f32 %v689, %v828
    %v853 = vadd.f32 %v690, %v827
    %v854 = vadd.f32 %v691, %v826
    %v855 = vadd.f32 %v692, %v825
    %v856 = vadd.f32 %v693, %v840
    %v857 = vld [vmem:[%s3] sm:$0xff]
    %v858 = vld [vmem:[%s3 + $0x8] sm:$0xff]
    %v859 = vld [vmem:[%s3 + $0x10] sm:$0xff]
    %v860 = vld [vmem:[%s3 + $0x18] sm:$0xff]
    %v861 = vld [vmem:[%s3 + $0x20] sm:$0xff]
    %v862 = vld [vmem:[%s3 + $0x28] sm:$0xff]
    %v863 = vld [vmem:[%s3 + $0x30] sm:$0xff]
    %v864 = vld [vmem:[%s3 + $0x38] sm:$0xff]
    %v865 = vld [vmem:[%s3 + $0x40] sm:$0xff]
    %v866 = vld [vmem:[%s3 + $0x48] sm:$0xff]
    %v867 = vld [vmem:[%s3 + $0x50] sm:$0xff]
    %v868 = vld [vmem:[%s3 + $0x58] sm:$0xff]
    %v869 = vld [vmem:[%s3 + $0x60] sm:$0xff]
    %v870 = vld [vmem:[%s3 + $0x68] sm:$0xff]
    %v871 = vld [vmem:[%s3 + $0x70] sm:$0xff]
    %v872 = vld [vmem:[%s3 + $0x78] sm:$0xff]
    %v873 = vadd.f32 %v841, %v857
    %v874 = vadd.f32 %v842, %v858
    %v875 = vadd.f32 %v843, %v859
    %v876 = vadd.f32 %v844, %v860
    %v877 = vadd.f32 %v845, %v861
    %v878 = vadd.f32 %v846, %v862
    %v879 = vadd.f32 %v847, %v863
    %v880 = vadd.f32 %v848, %v864
    %v881 = vadd.f32 %v849, %v865
    %v882 = vadd.f32 %v850, %v866
    %v883 = vadd.f32 %v851, %v867
    %v884 = vadd.f32 %v852, %v868
    %v885 = vadd.f32 %v853, %v869
    %v886 = vadd.f32 %v854, %v870
    %v887 = vadd.f32 %v855, %v871
    %v888 = vadd.f32 %v856, %v872
    %vm889 = vcmask 97280
    %v890 = vsel %vm889, %v873, -inf
    %v891 = vsel %vm889, %v874, -inf
    %v892 = vmax.f32 %v890, %v891
    %v893 = vrot.slane %v892, 4
    %v894 = vmax.f32 %v892, %v893
    %v895 = vrot.slane %v894, 2
    %v896 = vmax.f32 %v894, %v895
    %v897 = vrot.slane %v896, 1
    %v898 = vmax.f32 %v896, %v897
    %v899 = vsel %vm889, %v875, -inf
    %v900 = vsel %vm889, %v876, -inf
    %v901 = vmax.f32 %v899, %v900
    %v902 = vrot.slane %v901, 4
    %v903 = vmax.f32 %v901, %v902
    %v904 = vrot.slane %v903, 2
    %v905 = vmax.f32 %v903, %v904
    %v906 = vrot.slane %v905, 1
    %v907 = vmax.f32 %v905, %v906
    %v908 = vsel %vm889, %v877, -inf
    %v909 = vsel %vm889, %v878, -inf
    %v910 = vmax.f32 %v908, %v909
    %v911 = vrot.slane %v910, 4
    %v912 = vmax.f32 %v910, %v911
    %v913 = vrot.slane %v912, 2
    %v914 = vmax.f32 %v912, %v913
    %v915 = vrot.slane %v914, 1
    %v916 = vmax.f32 %v914, %v915
    %v917 = vsel %vm889, %v879, -inf
    %v918 = vsel %vm889, %v880, -inf
    %v919 = vmax.f32 %v917, %v918
    %v920 = vrot.slane %v919, 4
    %v921 = vmax.f32 %v919, %v920
    %v922 = vrot.slane %v921, 2
    %v923 = vmax.f32 %v921, %v922
    %v924 = vrot.slane %v923, 1
    %v925 = vmax.f32 %v923, %v924
    %v926 = vsel %vm889, %v881, -inf
    %v927 = vsel %vm889, %v882, -inf
    %v928 = vmax.f32 %v926, %v927
    %v929 = vrot.slane %v928, 4
    %v930 = vmax.f32 %v928, %v929
    %v931 = vrot.slane %v930, 2
    %v932 = vmax.f32 %v930, %v931
    %v933 = vrot.slane %v932, 1
    %v934 = vmax.f32 %v932, %v933
    %v935 = vsel %vm889, %v883, -inf
    %v936 = vsel %vm889, %v884, -inf
    %v937 = vmax.f32 %v935, %v936
    %v938 = vrot.slane %v937, 4
    %v939 = vmax.f32 %v937, %v938
    %v940 = vrot.slane %v939, 2
    %v941 = vmax.f32 %v939, %v940
    %v942 = vrot.slane %v941, 1
    %v943 = vmax.f32 %v941, %v942
    %v944 = vsel %vm889, %v885, -inf
    %v945 = vsel %vm889, %v886, -inf
    %v946 = vmax.f32 %v944, %v945
    %v947 = vrot.slane %v946, 4
    %v948 = vmax.f32 %v946, %v947
    %v949 = vrot.slane %v948, 2
    %v950 = vmax.f32 %v948, %v949
    %v951 = vrot.slane %v950, 1
    %v952 = vmax.f32 %v950, %v951
    %v953 = vsel %vm889, %v887, -inf
    %v954 = vsel %vm889, %v888, -inf
    %v955 = vmax.f32 %v953, %v954
    %v956 = vrot.slane %v955, 4
    %v957 = vmax.f32 %v955, %v956
    %v958 = vrot.slane %v957, 2
    %v959 = vmax.f32 %v957, %v958
    %v960 = vrot.slane %v959, 1
    %v961 = vmax.f32 %v959, %v960
    %v962 = vld [vmem:[%s2] sm:$0x1]
    %v964 = vlaneseq
    %v965 = vshrl.u32 %v964, 7
    %v966 = vsub.s32 0, %v965
    %v967 = vrot.slane %v962, %v966
    %v969 = vadd.f32 %v898, %v967
    %v970 = vadd.f32 %v907, %v967
    %v971 = vadd.f32 %v916, %v967
    %v972 = vadd.f32 %v925, %v967
    %v973 = vadd.f32 %v934, %v967
    %v974 = vadd.f32 %v943, %v967
    %v975 = vadd.f32 %v952, %v967
    %v976 = vadd.f32 %v961, %v967
    %v977 = vpack.c.bf16 %v969, %v969
    %v978 = vpack.c.bf16 %v970, %v970
    %v979 = vpack.c.bf16 %v971, %v971
    %v980 = vpack.c.bf16 %v972, %v972
    %v981 = vpack.c.bf16 %v973, %v973
    %v982 = vpack.c.bf16 %v974, %v974
    %v983 = vpack.c.bf16 %v975, %v975
    %v984 = vpack.c.bf16 %v976, %v976
    %v985 = vld [vmem:[%s4] sm:$0xf]
    %v986 = vld [vmem:[%s4 + $0x4] sm:$0x3]
    %v987 = vld [vmem:[%s5] sm:$0x1]
    %v989 = vlaneseq
    %v990 = vshrl.u32 %v989, 7
    %v991 = vsub.s32 0, %v990
    %v992 = vrot.slane %v987, %v991
    %v1002 = vunpack.c.l.b16 %v977
    %v1003 = vunpack.c.l.b16 %v978
    %v1004 = vunpack.c.l.b16 %v979
    %v1005 = vunpack.c.l.b16 %v980
    %v1006 = vunpack.c.l.b16 %v981
    %v1007 = vunpack.c.l.b16 %v982
    %v1008 = vunpack.c.l.b16 %v983
    %v1009 = vunpack.c.l.b16 %v984
    %v1010 = vrot.slane %v1003, 7
    %vm1011 = vcmask 1041409
    %v1012 = vsel %vm1011, %v1010, %v1002
    %v1013 = vrot.slane %v1004, 6
    %vm1014 = vcmask 1042434
    %v1015 = vsel %vm1014, %v1013, %v1012
    %v1016 = vrot.slane %v1005, 5
    %vm1017 = vcmask 1043459
    %v1018 = vsel %vm1017, %v1016, %v1015
    %v1019 = vrot.slane %v1006, 4
    %vm1020 = vcmask 1044484
    %v1021 = vsel %vm1020, %v1019, %v1018
    %v1022 = vrot.slane %v1007, 3
    %vm1023 = vcmask 1045509
    %v1024 = vsel %vm1023, %v1022, %v1021
    %v1025 = vrot.slane %v1008, 2
    %vm1026 = vcmask 1046534
    %v1027 = vsel %vm1026, %v1025, %v1024
    %v1028 = vrot.slane %v1009, 1
    %vm1029 = vcmask 1047559
    %v1030 = vsel %vm1029, %v1028, %v1027
    %v1031 = vpack.c.b16 %v1030, %v1030
    %v1034 = vunpack.c.l.b16 %v985
    %v1035 = vunpack.c.l.b16 %v986
    %v1036 = vpack.c.b16 %v1035, %v1034
    %v1038 = vsel %vm889, %v1031, 0
    %vm1040 = vcmask 1045504
    %v1042 = vsel %vm1040, %v1036, 0
    %1044 = vmatprep.subr.bf16.mxu0 0
    %1045 = vmatpush1.bf16.msra.mxu0 0
    %1046 = vmatprep.subr.bf16.mxu0 0
    %1047 = vmatpush1.bf16.msra.mxu0 0
    %1048 = vmatprep.subr.bf16.mxu0 0
    %1049 = vmatpush1.bf16.msra.mxu0 0
    %1050 = vmatprep.subr.bf16.mxu0 0
    %1051 = vmatpush1.bf16.msra.mxu0 0
    %1052 = vmatprep.subr.bf16.mxu0 0
    %1053 = vmatpush1.bf16.msra.mxu0 0
    %1054 = vmatprep.subr.bf16.mxu0 0
    %1055 = vmatpush1.bf16.msra.mxu0 0
    %1056 = vmatprep.subr.bf16.mxu0 0
    %1057 = vmatpush1.bf16.msra.mxu0 0
    %1058 = vmatprep.subr.bf16.mxu0 0
    %1059 = vmatpush1.bf16.msra.mxu0 %v1042
    %1060 = vmatprep.subr.bf16.mxu0 0
    %1061 = vmatpush2.bf16.msra.mxu0 0
    %1062 = vmatprep.subr.bf16.mxu0 0
    %1063 = vmatpush2.bf16.msra.mxu0 0
    %1064 = vmatprep.subr.bf16.mxu0 0
    %1065 = vmatpush2.bf16.msra.mxu0 0
    %1066 = vmatprep.subr.bf16.mxu0 0
    %1067 = vmatpush2.bf16.msra.mxu0 0
    %1068 = vmatprep.subr.bf16.mxu0 0
    %1069 = vmatpush2.bf16.msra.mxu0 0
    %1070 = vmatprep.subr.bf16.mxu0 0
    %1071 = vmatpush2.bf16.msra.mxu0 0
    %1072 = vmatprep.subr.bf16.mxu0 0
    %1073 = vmatpush2.bf16.msra.mxu0 0
    %1074 = vmatprep.subr.bf16.mxu0 0
    %1075 = vmatpush2.bf16.msra.mxu0 0
    %1076 = vmatprep.mubr.bf16.mxu0 0
    %1077 = vmatmul.mubr.bf16.gmra.mxu0 %v1038
    %v1078 = vpop.f32.mrf.mxu0
    %v1079 = vadd.f32 %v992, %v1078
    %v1080 = vpop.f32.mrf.mxu0
    %v1081 = vpop.f32.mrf.mxu0
    %v1082 = vpop.f32.mrf.mxu0
    %1083 = vdwg.mxu0
    %v1084 = vxor.u32 %v1079, 2147483648
    %v1085 = vmul.f32 %v1084, 1.442695
    %v1086 = vpow.pop %v1085
    %v1087 = vadd.f32 %v1086, 1.0
    %v1088 = vrcp.pop %v1087
    %v1089 = vmul.f32 1.0, %v1088
    %v1098 = vrot.slane %v970, 7
    %v1099 = vsel %vm1011, %v1098, %v969
    %v1100 = vrot.slane %v971, 6
    %v1101 = vsel %vm1014, %v1100, %v1099
    %v1102 = vrot.slane %v972, 5
    %v1103 = vsel %vm1017, %v1102, %v1101
    %v1104 = vrot.slane %v973, 4
    %v1105 = vsel %vm1020, %v1104, %v1103
    %v1106 = vrot.slane %v974, 3
    %v1107 = vsel %vm1023, %v1106, %v1105
    %v1108 = vrot.slane %v975, 2
    %v1109 = vsel %vm1026, %v1108, %v1107
    %v1110 = vrot.slane %v976, 1
    %v1111 = vsel %vm1029, %v1110, %v1109
    %1112 = vrot.lane.b32.xlu0 %v1111, 9
    %v1113 = vpop.permute.xlu0 %1112
    %vm1115 = vcmask 7168
    %v1116 = vsel %vm1115, %v1089, %v1079
    %vm1117 = vcmask 72704
    %v1118 = vsel %vm1117, %v1116, %v1113
    %vm1119 = vcmask 171008
    %1120 = vst.msk [vmem:[#allocation2] sm:$0xff] %vm1119, %v1118
    // Predicated region
    $region26: #{tpu_custom_call.1} parent=1 // pred_check
      _
    $region27: #{tpu_custom_call.1} parent=1 // pred_check_branch
      %1122 = sbr.rel (0) target = $region29
    $region28: #{tpu_custom_call.1} parent=1 // pred_region
      %s1124 = ssub.s32 128, 128
      %1125 = vsyncadd [#allocation3], %s1124
      %s1127 = sshll.u32 [#allocation2], 4
      %s1128 = int_to_ptr.vmem [resolvable:$true] %s1127
      %1130 = dma.vmem_to_hbm [thread:$0]  %s1128, 128, %s6, [#allocation3]
    $region29: #{tpu_custom_call.1} parent=1 // pred_fallthru
      _
    // Predicated region
    $region30: #{tpu_custom_call.1} parent=1 // pred_check
      _
    $region31: #{tpu_custom_call.1} parent=1 // pred_check_branch
      %1132 = sbr.rel (0) target = $region33
    $region32: #{tpu_custom_call.1} parent=1 // pred_region
      %1133 = dma.done [#allocation3], 128
    $region33: #{tpu_custom_call.1} parent=1 // pred_fallthru
      _
    %1134 = vsyncpa [#allocation3], 1

</llo_original>
